<compile_context>
chip_gen: v6e
topology: v6e:2x2x1
jax: 0.10.0
libtpu: 0.0.40
codegen_flags: <defaults>
</compile_context>

<pallas_src>
import functools

import jax
import jax.numpy as jnp
from jax.experimental import pallas as pl
from jax.experimental.pallas import tpu as pltpu

_LANES = 128
_NUM_CORES = 2  # leading "parallel" grid axis; megacore split on v7x, no-op elsewhere


def _intensity_loss_kernel(gen_ref, gt_ref, out_ref, acc_ref):
    """Per-core partial sum of squared differences.

    gen_ref, gt_ref : (tile_rows, 128) VMEM tiles
    out_ref         : (1, 1, 128) VMEM per-core per-lane partial sums
    acc_ref         : (tile_rows, 128) VMEM scratch accumulator (persists across j)
    """
    j = pl.program_id(1)

    @pl.when(j == 0)
    def _():
        acc_ref[...] = jnp.zeros_like(acc_ref)

    d = gen_ref[...].astype(jnp.float32) - gt_ref[...].astype(jnp.float32)
    # |(gen-gt)^2| == (gen-gt)^2 for real inputs, so no abs is needed.
    acc_ref[...] += d * d

    @pl.when(j == pl.num_programs(1) - 1)
    def _():
        # Single deferred cross-sublane reduce; lane reduce happens in the wrapper.
        out_ref[...] = jnp.sum(acc_ref[...], axis=0).reshape(1, 1, _LANES)


@functools.partial(jax.jit, static_argnames=("tile_rows",))
def intensity_loss(gen_frames, gt_frames, tile_rows: int = 1024):
    """Pallas equivalent of Intensity_Loss.forward. Returns a float32 scalar."""
    assert gen_frames.shape == gt_frames.shape
    total = gen_frames.size

    g = gen_frames.reshape(-1)
    t = gt_frames.reshape(-1)

    rows = total // _LANES
    # Adapt tile height for small inputs; keep it a multiple of 8 sublanes.
    tr = min(tile_rows, rows // _NUM_CORES)
    tr = (tr // 8) * 8

    if tr < 8:
        # Too small to be worth a kernel launch: compute directly.
        d = g.astype(jnp.float32) - t.astype(jnp.float32)
        return jnp.sum(jnp.abs(d * d)) / jnp.float32(total)

    n_j = rows // (_NUM_CORES * tr)          # tiles per core along the reduction axis
    cov = _NUM_CORES * n_j * tr * _LANES     # elements covered by the kernel

    g2 = g[:cov].reshape(_NUM_CORES * n_j * tr, _LANES)
    t2 = t[:cov].reshape(_NUM_CORES * n_j * tr, _LANES)

    in_map = lambda c, j: (c * n_j + j, 0)
    itemsize = gen_frames.dtype.itemsize

    partials = pl.pallas_call(
        _intensity_loss_kernel,
        out_shape=jax.ShapeDtypeStruct((_NUM_CORES, 1, _LANES), jnp.float32),
        grid_spec=pltpu.PrefetchScalarGridSpec(
            num_scalar_prefetch=0,
            grid=(_NUM_CORES, n_j),
            in_specs=[
                pl.BlockSpec((tr, _LANES), in_map),
                pl.BlockSpec((tr, _LANES), in_map),
            ],
            out_specs=pl.BlockSpec((1, 1, _LANES), lambda c, j: (c, 0, 0)),
            scratch_shapes=[pltpu.VMEM((tr, _LANES), jnp.float32)],
        ),
        compiler_params=pltpu.CompilerParams(
            dimension_semantics=("parallel", "arbitrary"),
        ),
        cost_estimate=pl.CostEstimate(
            flops=3 * cov, transcendentals=0, bytes_accessed=2 * cov * itemsize
        ),
    )(g2, t2)

    sse = jnp.sum(partials)

    # Tail (at most NUM_CORES * tile elements) handled without padding/copying full arrays.
    if cov < total:
        dtail = g[cov:].astype(jnp.float32) - t[cov:].astype(jnp.float32)
        sse = sse + jnp.sum(jnp.abs(dtail * dtail))

    return sse / jnp.float32(total)


if __name__ == "__main__":
    key = jax.random.PRNGKey(0)
    k1, k2, k3, k4, k5, k6 = jax.random.split(key, 6)

    # Primary small case consistent with frame-prediction usage: (N, C, H, W)
    gen = jax.random.normal(k1, (2, 4, 16, 16), dtype=jnp.float32)
    gt = jax.random.normal(k2, (2, 4, 16, 16), dtype=jnp.float32)
    loss = jax.block_until_ready(intensity_loss(gen, gt))
    ref = jnp.mean(jnp.abs((gen - gt) ** 2))
    assert jnp.allclose(loss, ref, rtol=1e-5, atol=1e-6), (loss, ref)

    # Non-aligned case: exercises kernel + unpadded tail path.
    gen2 = jax.random.normal(k3, (2, 4, 17, 16), dtype=jnp.float32)
    gt2 = jax.random.normal(k4, (2, 4, 17, 16), dtype=jnp.float32)
    loss2 = jax.block_until_ready(intensity_loss(gen2, gt2))
    ref2 = jnp.mean(jnp.abs((gen2 - gt2) ** 2))
    assert jnp.allclose(loss2, ref2, rtol=1e-5, atol=1e-6), (loss2, ref2)

    # Moderate case: exercises the full-size (1024, 128) tiles and grid (2, 2).
    gen3 = jax.random.normal(k5, (2, 4, 256, 256), dtype=jnp.float32)
    gt3 = jax.random.normal(k6, (2, 4, 256, 256), dtype=jnp.float32)
    loss3 = jax.block_until_ready(intensity_loss(gen3, gt3))
    ref3 = jnp.mean(jnp.abs((gen3 - gt3) ** 2))
    assert jnp.allclose(loss3, ref3, rtol=1e-5, atol=1e-5), (loss3, ref3)

    print("KERNEL_OK")
</pallas_src>

<mosaic_0001>
module attributes {stable_mosaic.version = 11 : i64} {
  func.func @_intensity_loss_kernel(%arg0: i32, %arg1: i32, %arg2: memref<8x128xf32, #tpu.memory_space<vmem>>, %arg3: memref<8x128xf32, #tpu.memory_space<vmem>>, %arg4: memref<1x1x128xf32, #tpu.memory_space<vmem>>, %arg5: memref<8x128xf32, #tpu.memory_space<vmem>>) attributes {dimension_semantics = [#tpu.dimension_semantics<parallel>, #tpu.dimension_semantics<arbitrary>], iteration_bounds = array<i64: 2, 1>, scalar_prefetch = 0 : i64, scratch_operands = 1 : i64, tpu.core_type = #tpu.core_type<tc>, window_params = [{transform_indices = @transform_0, window_bounds = array<i64: 8, 128>}, {transform_indices = @transform_1, window_bounds = array<i64: 8, 128>}, {transform_indices = @transform_2, window_bounds = array<i64: 1, 1, 128>}]} {
    %c0_i32 = arith.constant 0 : i32
    %0 = arith.cmpi eq, %arg1, %c0_i32 : i32
    %1 = arith.extui %0 : i1 to i32
    %c0_i32_0 = arith.constant 0 : i32
    %2 = arith.cmpi ne, %1, %c0_i32_0 : i32
    scf.if %2 {
      %cst = arith.constant 0.000000e+00 : f32
      %13 = vector.broadcast %cst : f32 to vector<8x128xf32>
      %c0_10 = arith.constant 0 : index
      %c0_11 = arith.constant 0 : index
      %14 = vector.load %arg5[%c0_10, %c0_11] : memref<8x128xf32, #tpu.memory_space<vmem>>, vector<8x128xf32>
      tpu.vector_store %arg5[%c0_10, %c0_11], %13 {strides = array<i32>} : memref<8x128xf32, #tpu.memory_space<vmem>>, vector<8x128xf32>,
    } else {
    }
    %c0 = arith.constant 0 : index
    %c0_1 = arith.constant 0 : index
    %3 = vector.load %arg2[%c0, %c0_1] : memref<8x128xf32, #tpu.memory_space<vmem>>, vector<8x128xf32>
    %c0_2 = arith.constant 0 : index
    %c0_3 = arith.constant 0 : index
    %4 = vector.load %arg3[%c0_2, %c0_3] : memref<8x128xf32, #tpu.memory_space<vmem>>, vector<8x128xf32>
    %5 = arith.subf %3, %4 : vector<8x128xf32>
    %c0_4 = arith.constant 0 : index
    %c0_5 = arith.constant 0 : index
    %6 = vector.load %arg5[%c0_4, %c0_5] : memref<8x128xf32, #tpu.memory_space<vmem>>, vector<8x128xf32>
    %7 = arith.mulf %5, %5 : vector<8x128xf32>
    %8 = arith.addf %6, %7 : vector<8x128xf32>
    %c0_6 = arith.constant 0 : index
    %c0_7 = arith.constant 0 : index
    %9 = vector.load %arg5[%c0_6, %c0_7] : memref<8x128xf32, #tpu.memory_space<vmem>>, vector<8x128xf32>
    tpu.vector_store %arg5[%c0_6, %c0_7], %8 {strides = array<i32>} : memref<8x128xf32, #tpu.memory_space<vmem>>, vector<8x128xf32>,
    %c0_i32_8 = arith.constant 0 : i32
    %10 = arith.cmpi eq, %arg1, %c0_i32_8 : i32
    %11 = arith.extui %10 : i1 to i32
    %c0_i32_9 = arith.constant 0 : i32
    %12 = arith.cmpi ne, %11, %c0_i32_9 : i32
    scf.if %12 {
      %c0_10 = arith.constant 0 : index
      %c0_11 = arith.constant 0 : index
      %13 = vector.load %arg5[%c0_10, %c0_11] : memref<8x128xf32, #tpu.memory_space<vmem>>, vector<8x128xf32>
      %cst = arith.constant dense<0.000000e+00> : vector<128xf32>
      %14 = vector.multi_reduction <add>, %13, %cst [0] : vector<8x128xf32> to vector<128xf32>
      %15 = vector.shape_cast %14 : vector<128xf32> to vector<1x1x128xf32>
      %c0_12 = arith.constant 0 : index
      %c0_13 = arith.constant 0 : index
      %c0_14 = arith.constant 0 : index
      %16 = vector.load %arg4[%c0_12, %c0_13, %c0_14] : memref<1x1x128xf32, #tpu.memory_space<vmem>>, vector<1x1x128xf32>
      tpu.vector_store %arg4[%c0_12, %c0_13, %c0_14], %15 {strides = array<i32>} : memref<1x1x128xf32, #tpu.memory_space<vmem>>, vector<1x1x128xf32>,
    } else {
    }
    return
  }
  func.func @transform_0(%arg0: i32, %arg1: i32) -> (i32, i32) {
    %c1_i32 = arith.constant 1 : i32
    %0 = arith.muli %arg0, %c1_i32 : i32
    %1 = arith.addi %0, %arg1 : i32
    %c0_i32 = arith.constant 0 : i32
    %c0_i32_0 = arith.constant 0 : i32
    return %1, %c0_i32 : i32, i32
  }
  func.func @transform_1(%arg0: i32, %arg1: i32) -> (i32, i32) {
    %c1_i32 = arith.constant 1 : i32
    %0 = arith.muli %arg0, %c1_i32 : i32
    %1 = arith.addi %0, %arg1 : i32
    %c0_i32 = arith.constant 0 : i32
    %c0_i32_0 = arith.constant 0 : i32
    return %1, %c0_i32 : i32, i32
  }
  func.func @transform_2(%arg0: i32, %arg1: i32) -> (i32, i32, i32) {
    %c0_i32 = arith.constant 0 : i32
    %c0_i32_0 = arith.constant 0 : i32
    %c0_i32_1 = arith.constant 0 : i32
    return %arg0, %c0_i32, %c0_i32_0 : i32, i32, i32
  }
}

</mosaic_0001>

<llo_original>
// kernel: intensity_loss.1
$region0: #{intensity_loss.1}
  #allocation0 [shape = 'u32[]', space=smem, size = 0x4, offset = 0x4, fixed_abs, tag = 'smem constant byte address 0x4 - core index']
  #allocation1 [shape = 'u32[144,128]{1,0:T(1,128)}', space=vmem, size = 0x12000, scoped, tag = 'internal scratch']
  #allocation2 [shape = 'f32[8,128]{1,0:T(8,128)}', space=vmem, size = 0x1000, scoped, tag = 'scratch operand']
  %s0 = inlined_call_operand.vmem [shape: f32[16,128], index: 0, kind: input, shape index: {}]
  %s1 = inlined_call_operand.vmem [shape: f32[16,128], index: 1, kind: input, shape index: {}]
  %s2 = inlined_call_operand.vmem [shape: f32[2,1,128], index: 2, kind: output, shape index: {}]
  %s3 = sld [smem:[#allocation0]]
  $region49: #{intensity_loss.1} parent=0
    _
  %s5 = ssub.s32 1, %s3
  %s6 = scalar_select 0, %s5, %s3
  loop: start=0, step=1, limit=4
  $region2: #{intensity_loss.1} parent=0 // loop_pre_header
    _
  $region3: #{intensity_loss.1} parent=0 // loop_header
    %s8 = sphi 0, %s12
    %p9 = scmp.ge.s32.totalorder %s8, 4
    %s15 = sphi 0, %s27
    %s16 = sphi 0, %s23
    %s17 = sphi 0, %s15
    %s18 = sphi 0, %s16
    %s19 = sphi 0, %s17
    %s20 = sphi 0, %s18
    %s32 = sphi 0, %s34
    %s35 = sphi 0, %s32
    %s36 = sphi 0, %s35
    %s52 = sphi 0, %s36
    %s60 = sphi 0, %s62
    %s63 = sphi 0, %s60
    %s64 = sphi 0, %s63
    %s80 = sphi 0, %s64
    %s86 = sphi 0, %s88
    %s89 = sphi 0, %s86
    %s90 = sphi 0, %s89
    %s106 = sphi 0, %s90
  $region4: #{intensity_loss.1} parent=0 // loop_header_branch
    %11 = sbr.rel (%p9) target = $region8
  $region5: #{intensity_loss.1} parent=0 // loop_body
    %s13 = ssub.s32 %s8, 1
    %s14 = ssub.s32 %s8, 2
    %s21 = sadd.s32 1, %s16
    %p22 = scmp.ge.s32.totalorder %s21, 1
    %s23 = scalar_select %p22, 0, %s21
    %s24 = sadd.s32 1, %s15
    %s25 = scalar_select %p22, %s24, %s15
    %p26 = scmp.ge.s32.totalorder %s25, 2
    %s27 = scalar_select %p26, 0, %s25
    %s28 = sadd.s32 %s15, %s16
    %s29 = sadd.s32 %s27, %s23
    %s30 = ssub.s32 %s28, %s29
    %p31 = scmp.eq.s32.totalorder %s30, 0
    %s33 = sadd.s32 %s32, 1
    %s34 = scalar_select %p31, %s32, %s33
    %p37 = pneg %p31
    %p38 = scmp.eq.s32.totalorder %s8, 1
    %p39 = por %p37, %p38
    %p40 = scmp.ne.s32.totalorder %s32, %s35
    %p41 = scmp.eq.s32.totalorder %s8, 0
    %p42 = por %p40, %p41
    %p43 = scmp.ne.s32.totalorder %s32, %s35
    %p44 = scmp.eq.s32.totalorder %s13, 1
    %p45 = por %p43, %p44
    %p46 = scmp.ne.s32.totalorder %s35, %s36
    %p47 = scmp.eq.s32.totalorder %s13, 0
    %p48 = por %p46, %p47
    %p49 = scmp.ne.s32.totalorder %s35, %s36
    %p50 = scmp.eq.s32.totalorder %s14, 1
    %p51 = por %p49, %p50
    %p53 = scmp.ne.s32.totalorder %s36, %s52
    %p54 = scmp.eq.s32.totalorder %s14, 0
    %p55 = por %p53, %p54
    %s56 = sadd.s32 %s15, %s16
    %s57 = sadd.s32 %s27, %s23
    %s58 = ssub.s32 %s56, %s57
    %p59 = scmp.eq.s32.totalorder %s58, 0
    %s61 = sadd.s32 %s60, 1
    %s62 = scalar_select %p59, %s60, %s61
    %p65 = pneg %p59
    %p66 = scmp.eq.s32.totalorder %s8, 1
    %p67 = por %p65, %p66
    %p68 = scmp.ne.s32.totalorder %s60, %s63
    %p69 = scmp.eq.s32.totalorder %s8, 0
    %p70 = por %p68, %p69
    %p71 = scmp.ne.s32.totalorder %s60, %s63
    %p72 = scmp.eq.s32.totalorder %s13, 1
    %p73 = por %p71, %p72
    %p74 = scmp.ne.s32.totalorder %s63, %s64
    %p75 = scmp.eq.s32.totalorder %s13, 0
    %p76 = por %p74, %p75
    %p77 = scmp.ne.s32.totalorder %s63, %s64
    %p78 = scmp.eq.s32.totalorder %s14, 1
    %p79 = por %p77, %p78
    %p81 = scmp.ne.s32.totalorder %s64, %s80
    %p82 = scmp.eq.s32.totalorder %s14, 0
    %p83 = por %p81, %p82
    %s84 = ssub.s32 %s15, %s27
    %p85 = scmp.eq.s32.totalorder %s84, 0
    %s87 = sadd.s32 %s86, 1
    %s88 = scalar_select %p85, %s86, %s87
    %p91 = pneg %p85
    %p92 = scmp.eq.s32.totalorder %s8, 1
    %p93 = por %p91, %p92
    %p94 = scmp.ne.s32.totalorder %s86, %s89
    %p95 = scmp.eq.s32.totalorder %s8, 0
    %p96 = por %p94, %p95
    %p97 = scmp.ne.s32.totalorder %s86, %s89
    %p98 = scmp.eq.s32.totalorder %s13, 1
    %p99 = por %p97, %p98
    %p100 = scmp.ne.s32.totalorder %s89, %s90
    %p101 = scmp.eq.s32.totalorder %s13, 0
    %p102 = por %p100, %p101
    %p103 = scmp.ne.s32.totalorder %s89, %s90
    %p104 = scmp.eq.s32.totalorder %s14, 1
    %p105 = por %p103, %p104
    %p107 = scmp.ne.s32.totalorder %s90, %s106
    %p108 = scmp.eq.s32.totalorder %s14, 0
    %p109 = por %p107, %p108
    %p110 = scmp.le.s32.totalorder 1, %s8
    %p111 = scmp.lt.s32.totalorder %s8, 3
    %p112 = pnand %p110, %p111
    %p113 = pneg %p112
    // Predicated region
    $region9: #{intensity_loss.1} parent=5 // pred_check
      _
    $region10: #{intensity_loss.1} parent=5 // pred_check_branch
      %115 = sbr.rel (%p112) target = $region12
    $region11: #{intensity_loss.1} parent=5 // pred_region
      %s116 = ssub.s32 %s8, 1
    $region12: #{intensity_loss.1} parent=5 // pred_fallthru
      _
    %p117 = scmp.lt.s32.totalorder %s8, 2
    // Predicated region
    $region13: #{intensity_loss.1} parent=5 // pred_check
      %p118 = pneg %p117
    $region14: #{intensity_loss.1} parent=5 // pred_check_branch
      %120 = sbr.rel (%p118) target = $region16
    $region15: #{intensity_loss.1} parent=5 // pred_region
      // Predicated region
      $region17: #{intensity_loss.1} parent=15 // pred_check
        %p121 = pneg %p42
      $region18: #{intensity_loss.1} parent=15 // pred_check_branch
        %123 = sbr.rel (%p121) target = $region20
      $region19: #{intensity_loss.1} parent=15 // pred_region
        %s124 = sadd.s32 %s15, %s16
        %p125 = scmp.lt.s32.totalorder %s124, 1
        %s126 = scalar_select %p125, %s124, 1
        %s127 = smul.addr %s126, 8
        %s128 = scalar_lea.vmem %s0, %s127
        %s129 = sadd.s32 %s15, %s16
      $region20: #{intensity_loss.1} parent=15 // pred_fallthru
        _
      // Predicated region
      $region21: #{intensity_loss.1} parent=15 // pred_check
        %p130 = pneg %p70
      $region22: #{intensity_loss.1} parent=15 // pred_check_branch
        %132 = sbr.rel (%p130) target = $region24
      $region23: #{intensity_loss.1} parent=15 // pred_region
        %s133 = sadd.s32 %s15, %s16
        %p134 = scmp.lt.s32.totalorder %s133, 1
        %s135 = scalar_select %p134, %s133, 1
        %s136 = smul.addr %s135, 8
        %s137 = scalar_lea.vmem %s1, %s136
        %s138 = sadd.s32 %s15, %s16
      $region24: #{intensity_loss.1} parent=15 // pred_fallthru
        _
    $region16: #{intensity_loss.1} parent=5 // pred_fallthru
      _
    %p139 = scmp.le.s32.totalorder 1, %s8
    %p140 = scmp.lt.s32.totalorder %s8, 3
    %p141 = pnand %p139, %p140
    %p142 = pneg %p141
    // Predicated region
    $region25: #{intensity_loss.1} parent=5 // pred_check
      _
    $region26: #{intensity_loss.1} parent=5 // pred_check_branch
      %144 = sbr.rel (%p141) target = $region28
    $region27: #{intensity_loss.1} parent=5 // pred_region
      %s145 = ssub.s32 %s8, 1
      %s146 = sadd.s32 %s17, %s18
      %p147 = scmp.lt.s32.totalorder %s146, 1
      %s148 = scalar_select %p147, %s146, 1
      %s149 = smul.addr %s148, 8
      %s150 = scalar_lea.vmem %s0, %s149
      %p151 = pneg %p48
      %p152 = pneg %p45
      %s153 = sadd.s32 %s17, %s18
      %p154 = scmp.lt.s32.totalorder %s153, 1
      %s155 = scalar_select %p154, %s153, 1
      %s156 = smul.addr %s155, 8
      %s157 = scalar_lea.vmem %s1, %s156
      %p158 = pneg %p76
      %p159 = pneg %p73
      %p160 = pneg %p102
      %p161 = pneg %p99
      %p162 = scmp.lt.s32.totalorder %s17, 1
      %s163 = scalar_select %p162, %s17, 1
      %s164 = scalar_lea.vmem %s2, %s163
      %s165 = sadd.s32 %s17, %s18
      %p166 = scmp.lt.s32.totalorder %s165, 1
      %s167 = scalar_select %p166, %s165, 1
      %s168 = smul.addr %s167, 8
      %s169 = scalar_lea.vmem %s0, %s168
      %s170 = sadd.s32 %s17, %s18
      %s171 = sadd.s32 %s17, %s18
      %p172 = scmp.lt.s32.totalorder %s171, 1
      %s173 = scalar_select %p172, %s171, 1
      %s174 = smul.addr %s173, 8
      %s175 = scalar_lea.vmem %s1, %s174
      %s176 = sadd.s32 %s17, %s18
      %p177 = scmp.lt.s32.totalorder %s17, 1
      %s178 = scalar_select %p177, %s17, 1
      %s179 = scalar_lea.vmem %s2, %s178
      %p180 = scmp.eq.s32.totalorder %s18, 0
      // Predicated region
      $region29: #{intensity_loss.1} parent=27 // pred_check
        %p181 = pneg %p180
      $region30: #{intensity_loss.1} parent=27 // pred_check_branch
        %183 = sbr.rel (%p181) target = $region32
      $region31: #{intensity_loss.1} parent=27 // pred_region
        %184 = vst [vmem:[#allocation2] sm:$0xff] 0.0
      $region32: #{intensity_loss.1} parent=27 // pred_fallthru
        _
      %v185 = vld [vmem:[%s169] sm:$0xff]
      %v186 = vld [vmem:[%s175] sm:$0xff]
      %v187 = vsub.f32 %v185, %v186
      %v188 = vld [vmem:[#allocation2] sm:$0xff]
      %v189 = vmul.f32 %v187, %v187
      %v190 = vadd.f32 %v188, %v189
      %191 = vst [vmem:[#allocation2] sm:$0xff] %v190
      // Predicated region
      $region33: #{intensity_loss.1} parent=27 // pred_check
        %p192 = pneg %p180
      $region34: #{intensity_loss.1} parent=27 // pred_check_branch
        %194 = sbr.rel (%p192) target = $region36
      $region35: #{intensity_loss.1} parent=27 // pred_region
        %v195 = vld [vmem:[#allocation2] sm:$0xff]
        %v196 = vrot.slane %v195, 4
        %v197 = vadd.f32 %v195, %v196
        %v198 = vrot.slane %v197, 2
        %v199 = vadd.f32 %v197, %v198
        %v200 = vrot.slane %v199, 1
        %v201 = vadd.f32 %v199, %v200
        %202 = vst [vmem:[%s179] sm:$0x1] %v201
      $region36: #{intensity_loss.1} parent=27 // pred_fallthru
        _
      %p203 = scmp.lt.s32.totalorder %s17, 1
      %s204 = scalar_select %p203, %s17, 1
      %s205 = scalar_lea.vmem %s2, %s204
      // Predicated region
      $region37: #{intensity_loss.1} parent=27 // pred_check
        %p206 = pneg %p99
      $region38: #{intensity_loss.1} parent=27 // pred_check_branch
        %208 = sbr.rel (%p206) target = $region40
      $region39: #{intensity_loss.1} parent=27 // pred_region
        _
      $region40: #{intensity_loss.1} parent=27 // pred_fallthru
        _
    $region28: #{intensity_loss.1} parent=5 // pred_fallthru
      _
    %p209 = scmp.le.s32.totalorder 2, %s8
    // Predicated region
    $region41: #{intensity_loss.1} parent=5 // pred_check
      %p210 = pneg %p209
    $region42: #{intensity_loss.1} parent=5 // pred_check_branch
      %212 = sbr.rel (%p210) target = $region44
    $region43: #{intensity_loss.1} parent=5 // pred_region
      %s213 = ssub.s32 %s8, 2
      // Predicated region
      $region45: #{intensity_loss.1} parent=43 // pred_check
        %p214 = pneg %p105
      $region46: #{intensity_loss.1} parent=43 // pred_check_branch
        %216 = sbr.rel (%p214) target = $region48
      $region47: #{intensity_loss.1} parent=43 // pred_region
        %p217 = scmp.lt.s32.totalorder %s19, 1
        %s218 = scalar_select %p217, %s19, 1
        %s219 = scalar_lea.vmem %s2, %s218
      $region48: #{intensity_loss.1} parent=43 // pred_fallthru
        _
    $region44: #{intensity_loss.1} parent=5 // pred_fallthru
      _
  $region6: #{intensity_loss.1} parent=0 // loop_footer
    %s12 = sadd.s32 1, %s8
  $region7: #{intensity_loss.1} parent=0 // loop_footer_branch
    %7 = sbr.rel target = $region3
  $region8: #{intensity_loss.1} parent=0 // loop_exit
    _

</llo_original>
